<compile_context>
chip_gen: v7x
topology: tpu7x:2x2x1
jax: 0.10.0
libtpu: 0.0.40
codegen_flags: <defaults>
</compile_context>

<pallas_src>
import functools

import jax
import jax.numpy as jnp
from jax import lax
from jax.experimental import pallas as pl
from jax.experimental.pallas import tpu as pltpu


_MIB = 1024 * 1024
# Budget for one (input tile + output tile) pair. The f32 compute temporaries
# are bounded separately by in-kernel sub-chunking, so this can be large on
# every generation.
_IO_PAIR_BUDGET = 16 * _MIB
# Live f32 intermediates are bounded to ~3-4x this via sub-chunking.
_F32_CHUNK_BUDGET = 2 * _MIB
# Total scoped-VMEM ceiling: safe on v7x (64 MiB/TC) and well under the
# 128 MiB of v5e/v6e; still far above v5e's 16 MiB default so the 2-deep
# pipeline is preserved.
_VMEM_LIMIT_CEILING = 48 * _MIB


def _sublane_pack(dtype) -> int:
    itemsize = jnp.dtype(dtype).itemsize
    return {1: 32, 2: 16, 4: 8}.get(itemsize, 8)


def _layernorm_kernel(x_ref, w_ref, b_ref, o_ref, *, eps, hidden, sub_rows):
    # x_ref/o_ref: (TM, H) row tile; w_ref/b_ref: (1, H) f32 params (resident,
    # zero_centered +1 already folded in by the wrapper).
    w = w_ref[...]
    b = b_ref[...]
    inv_h = 1.0 / float(hidden)
    n_sub = x_ref.shape[0] // sub_rows  # exact: both are pack * 2^k

    def chunk(row_start):
        x = x_ref[pl.ds(row_start, sub_rows), :].astype(jnp.float32)
        mean = jnp.sum(x, axis=-1, keepdims=True) * inv_h
        d = x - mean
        # Two-pass variance (subtract mean first) for accuracy; extra VPU/XLU
        # work over VMEM-resident data is hidden under the HBM DMAs.
        var = jnp.sum(d * d, axis=-1, keepdims=True) * inv_h
        inv_std = lax.rsqrt(var + eps)
        o_ref[pl.ds(row_start, sub_rows), :] = (d * inv_std * w + b).astype(o_ref.dtype)

    if n_sub <= 1:
        chunk(0)
    else:
        # Real loop (scf.for) so the live f32 ranges are bounded per sub-chunk
        # (a static Python for would not bound them).
        @pl.loop(0, n_sub)
        def _(c):
            chunk(pl.multiple_of(c * sub_rows, sub_rows))


def _pick_tiles(rows: int, hidden: int, dtype) -> tuple[int, int]:
    """Pick (tm, sub_rows); both are pack * 2^k and sub_rows divides tm."""
    pack = _sublane_pack(dtype)
    itemsize = jnp.dtype(dtype).itemsize
    bytes_per_row_io = max(hidden * itemsize * 2, 1)  # input + output row
    budget_rows = max(pack, _IO_PAIR_BUDGET // bytes_per_row_io)
    rows_rounded = ((rows + pack - 1) // pack) * pack

    # Grow tm by powers of two while (a) staying inside the I/O byte budget
    # and (b) keeping at least ~2 grid steps so both v7x TensorCores pull HBM
    # and the double-buffered pipeline has something to overlap.
    tm = pack
    while tm * 2 <= budget_rows and tm * 4 <= rows_rounded:
        tm *= 2

    # Sub-chunk bounds the live f32 intermediates so the big DMA tile does not
    # blow up the VMEM footprint (key on v7x's 64 MiB/TC VMEM).
    sub_rows = pack
    while sub_rows * 2 <= tm and sub_rows * 2 * hidden * 4 <= _F32_CHUNK_BUDGET:
        sub_rows *= 2
    return tm, sub_rows


def layer_norm(x, weight, bias, *, eps=1e-5, zero_centered=False):
    """LayerNorm over the last dim. x: [..., H]; weight, bias: [H]."""
    orig_shape = x.shape
    hidden = orig_shape[-1]
    x2d = x.reshape(-1, hidden)
    rows = x2d.shape[0]

    tm, sub_rows = _pick_tiles(rows, hidden, x2d.dtype)
    num_tiles = pl.cdiv(rows, tm)
    # No padding / slicing: Pallas handles the ragged last row tile (OOB rows
    # in the edge block only affect their own masked-out writes).

    # Hoist param casts (and the zero-centered +1) out of the kernel.
    w_eff = weight.astype(jnp.float32)
    if zero_centered:
        w_eff = w_eff + 1.0
    w2d = w_eff.reshape(1, hidden)
    b2d = bias.astype(jnp.float32).reshape(1, hidden)

    itemsize = jnp.dtype(x2d.dtype).itemsize
    tile_io = tm * hidden * itemsize
    est = (
        2 * tile_io                    # double-buffered input
        + 2 * tile_io                  # double-buffered output
        + 4 * sub_rows * hidden * 4    # live f32 temporaries (sub-chunked)
        + 4 * hidden * 4               # resident f32 params (double-buffered)
    )
    vmem_limit = int(min(_VMEM_LIMIT_CEILING, max(32 * _MIB, est + 6 * _MIB)))

    kernel = functools.partial(
        _layernorm_kernel, eps=eps, hidden=hidden, sub_rows=sub_rows
    )

    out = pl.pallas_call(
        kernel,
        out_shape=jax.ShapeDtypeStruct((rows, hidden), x2d.dtype),
        grid_spec=pltpu.PrefetchScalarGridSpec(
            num_scalar_prefetch=0,
            grid=(num_tiles,),
            in_specs=[
                pl.BlockSpec((tm, hidden), lambda i: (i, 0)),
                pl.BlockSpec((1, hidden), lambda i: (0, 0)),
                pl.BlockSpec((1, hidden), lambda i: (0, 0)),
            ],
            out_specs=pl.BlockSpec((tm, hidden), lambda i: (i, 0)),
        ),
        compiler_params=pltpu.CompilerParams(
            dimension_semantics=("parallel",),
            vmem_limit_bytes=vmem_limit,
        ),
    )(x2d, w2d, b2d)

    return out.reshape(orig_shape)


def _reference(x, weight, bias, eps, zero_centered):
    xf = x.astype(jnp.float32)
    mean = jnp.mean(xf, axis=-1, keepdims=True)
    var = jnp.mean((xf - mean) ** 2, axis=-1, keepdims=True)
    w = weight.astype(jnp.float32) + (1.0 if zero_centered else 0.0)
    y = (xf - mean) * lax.rsqrt(var + eps) * w + bias.astype(jnp.float32)
    return y.astype(x.dtype)


if __name__ == "__main__":
    key = jax.random.PRNGKey(0)
    k1, k2, k3 = jax.random.split(key, 3)

    batch, seq, hidden = 2, 8, 1024  # hidden in _PERSIST_LN_SIZES (lane-dense)
    eps = 1e-5

    x = jax.random.normal(k1, (batch, seq, hidden), dtype=jnp.float32)

    # Module defaults: weight_init_method=init_ones_, bias_init_method=init_zeros_.
    # Use non-trivial params here so the affine path is actually exercised.
    weight = 1.0 + 0.1 * jax.random.normal(k2, (hidden,), dtype=jnp.float32)
    bias = 0.1 * jax.random.normal(k3, (hidden,), dtype=jnp.float32)

    # Standard LayerNorm path.
    out = jax.block_until_ready(layer_norm(x, weight, bias, eps=eps))
    ref = _reference(x, weight, bias, eps, zero_centered=False)
    assert jnp.allclose(out, ref, atol=1e-4, rtol=1e-5), "layer_norm mismatch"

    # Zero-centered weight parameterization (triton path in the module).
    w0 = 0.1 * jax.random.normal(k2, (hidden,), dtype=jnp.float32)
    out_zc = jax.block_until_ready(
        layer_norm(x, w0, bias, eps=eps, zero_centered=True)
    )
    ref_zc = _reference(x, w0, bias, eps, zero_centered=True)
    assert jnp.allclose(out_zc, ref_zc, atol=1e-4, rtol=1e-5), "zero_centered mismatch"

    # Non-divisible row counts (exercise the ragged last tile, no padding).
    for odd_rows in (3, 20):
        x_odd = jax.random.normal(k1, (odd_rows, hidden), dtype=jnp.float32)
        out_odd = jax.block_until_ready(
            layer_norm(x_odd, weight, bias, eps=eps, zero_centered=False)
        )
        ref_odd = _reference(x_odd, weight, bias, eps, zero_centered=False)
        assert jnp.allclose(out_odd, ref_odd, atol=1e-4, rtol=1e-5), (
            f"ragged rows mismatch (rows={odd_rows})"
        )

    # bf16 input (exercises the 16-row sublane pack + f32 compute path).
    x_bf = jax.random.normal(k1, (4, 8, hidden), dtype=jnp.bfloat16)
    out_bf = jax.block_until_ready(
        layer_norm(x_bf, weight, bias, eps=eps, zero_centered=False)
    )
    ref_bf = _reference(x_bf, weight, bias, eps, zero_centered=False)
    assert jnp.allclose(
        out_bf.astype(jnp.float32), ref_bf.astype(jnp.float32), atol=5e-2, rtol=5e-2
    ), "bf16 mismatch"

    # TODO(synk): backward pass (ln_bwd / grad accumulation) is not implemented;
    # forward only, matching the requested scope.
    print("KERNEL_OK")
</pallas_src>

<mosaic_0001>
module attributes {stable_mosaic.version = 11 : i64} {
  func.func @_layernorm_kernel(%arg0: i32, %arg1: memref<8x1024xf32, #tpu.memory_space<vmem>>, %arg2: memref<1x1024xf32, #tpu.memory_space<vmem>>, %arg3: memref<1x1024xf32, #tpu.memory_space<vmem>>, %arg4: memref<8x1024xf32, #tpu.memory_space<vmem>>) attributes {dimension_semantics = [#tpu.dimension_semantics<parallel>], iteration_bounds = array<i64: 2>, scalar_prefetch = 0 : i64, scratch_operands = 0 : i64, tpu.core_type = #tpu.core_type<tc>, window_params = [{transform_indices = @transform_0, window_bounds = array<i64: 8, 1024>}, {pipeline_mode = #tpu.pipeline_mode<synchronous>, transform_indices = @transform_1, window_bounds = array<i64: 1, 1024>}, {pipeline_mode = #tpu.pipeline_mode<synchronous>, transform_indices = @transform_2, window_bounds = array<i64: 1, 1024>}, {transform_indices = @transform_3, window_bounds = array<i64: 8, 1024>}]} {
    %c0 = arith.constant 0 : index
    %c0_0 = arith.constant 0 : index
    %0 = vector.load %arg2[%c0, %c0_0] : memref<1x1024xf32, #tpu.memory_space<vmem>>, vector<1x1024xf32>
    %c0_1 = arith.constant 0 : index
    %c0_2 = arith.constant 0 : index
    %1 = vector.load %arg3[%c0_1, %c0_2] : memref<1x1024xf32, #tpu.memory_space<vmem>>, vector<1x1024xf32>
    %c0_3 = arith.constant 0 : index
    %c0_4 = arith.constant 0 : index
    %2 = vector.load %arg1[%c0_3, %c0_4] : memref<8x1024xf32, #tpu.memory_space<vmem>>, vector<8x1024xf32>
    %cst = arith.constant dense<0.000000e+00> : vector<8xf32>
    %3 = vector.multi_reduction <add>, %2, %cst [1] : vector<8x1024xf32> to vector<8xf32>
    %4 = vector.shape_cast %3 : vector<8xf32> to vector<8x1xf32>
    %cst_5 = arith.constant 9.765625E-4 : f32
    %5 = vector.broadcast %cst_5 : f32 to vector<8x1xf32>
    %6 = arith.mulf %4, %5 : vector<8x1xf32>
    %7 = vector.broadcast %6 : vector<8x1xf32> to vector<8x1024xf32>
    %8 = arith.subf %2, %7 : vector<8x1024xf32>
    %9 = arith.mulf %8, %8 : vector<8x1024xf32>
    %cst_6 = arith.constant dense<0.000000e+00> : vector<8xf32>
    %10 = vector.multi_reduction <add>, %9, %cst_6 [1] : vector<8x1024xf32> to vector<8xf32>
    %11 = vector.shape_cast %10 : vector<8xf32> to vector<8x1xf32>
    %cst_7 = arith.constant 9.765625E-4 : f32
    %12 = vector.broadcast %cst_7 : f32 to vector<8x1xf32>
    %13 = arith.mulf %11, %12 : vector<8x1xf32>
    %cst_8 = arith.constant 9.99999974E-6 : f32
    %14 = vector.broadcast %cst_8 : f32 to vector<8x1xf32>
    %15 = arith.addf %13, %14 : vector<8x1xf32>
    %16 = math.rsqrt %15 : vector<8x1xf32>
    %17 = vector.broadcast %16 : vector<8x1xf32> to vector<8x1024xf32>
    %18 = arith.mulf %8, %17 : vector<8x1024xf32>
    %19 = vector.broadcast %0 : vector<1x1024xf32> to vector<8x1024xf32>
    %20 = arith.mulf %18, %19 : vector<8x1024xf32>
    %21 = vector.broadcast %1 : vector<1x1024xf32> to vector<8x1024xf32>
    %22 = arith.addf %20, %21 : vector<8x1024xf32>
    %c0_9 = arith.constant 0 : index
    %c0_10 = arith.constant 0 : index
    %23 = vector.load %arg4[%c0_9, %c0_10] : memref<8x1024xf32, #tpu.memory_space<vmem>>, vector<8x1024xf32>
    tpu.vector_store %arg4[%c0_9, %c0_10], %22 {strides = array<i32>} : memref<8x1024xf32, #tpu.memory_space<vmem>>, vector<8x1024xf32>,
    return
  }
  func.func @transform_0(%arg0: i32) -> (i32, i32) {
    %c0_i32 = arith.constant 0 : i32
    %c0_i32_0 = arith.constant 0 : i32
    return %arg0, %c0_i32 : i32, i32
  }
  func.func @transform_1(%arg0: i32) -> (i32, i32) {
    %c0_i32 = arith.constant 0 : i32
    %c0_i32_0 = arith.constant 0 : i32
    %c0_i32_1 = arith.constant 0 : i32
    return %c0_i32, %c0_i32_0 : i32, i32
  }
  func.func @transform_2(%arg0: i32) -> (i32, i32) {
    %c0_i32 = arith.constant 0 : i32
    %c0_i32_0 = arith.constant 0 : i32
    %c0_i32_1 = arith.constant 0 : i32
    return %c0_i32, %c0_i32_0 : i32, i32
  }
  func.func @transform_3(%arg0: i32) -> (i32, i32) {
    %c0_i32 = arith.constant 0 : i32
    %c0_i32_0 = arith.constant 0 : i32
    return %arg0, %c0_i32 : i32, i32
  }
}

</mosaic_0001>

<llo_original>
// kernel: tpu_custom_call.1
$region0: #{tpu_custom_call.1}
  #allocation0 [shape = 'u32[]', space=smem, size = 0x4, offset = 0x4, fixed_abs, tag = 'smem constant byte address 0x4 - core index']
  #allocation1 [shape = 'u32[144,128]{1,0:T(1,128)}', space=vmem, size = 0x12000, scoped, tag = 'internal scratch']
  %s0 = inlined_call_operand.hbm [shape: f32[16,1024], index: 0, kind: input, shape index: {}]
  %s1 = inlined_call_operand.hbm [shape: f32[1,1024], index: 1, kind: input, shape index: {}]
  %s2 = inlined_call_operand.hbm [shape: f32[1,1024], index: 2, kind: input, shape index: {}]
  %s3 = inlined_call_operand.hbm [shape: f32[16,1024], index: 3, kind: output, shape index: {}]
  %s4 = sld [smem:[#allocation0]]
  $region57: #{tpu_custom_call.1} parent=0
    _
  %s6 = ssub.s32 1, %s4
  %s7 = scalar_select 0, %s6, %s4
  $region1: #{tpu_custom_call.1} parent=0
    #allocation2 [shape = 'u8[65536]{0}', space=vmem, size = 0x10000, scoped, tag = 'input window, operand 0']
    #allocation3 [shape = 's32[2]{0}', space=sflag, size = 0x8, scoped, tag = 'scoped memory for tpu_custom_call.1']
    #allocation4 [shape = 's32[2]{0}', space=sflag, size = 0x8, scoped, tag = 'scoped memory for tpu_custom_call.1']
    #allocation5 [shape = 'u8[4096]{0}', space=vmem, size = 0x1000, scoped, tag = 'input window, operand 1, single buffered']
    #allocation6 [shape = 's32[1]{0}', space=sflag, size = 0x4, scoped, tag = 'scoped memory for tpu_custom_call.1']
    #allocation7 [shape = 'u8[4096]{0}', space=vmem, size = 0x1000, scoped, tag = 'input window, operand 2, single buffered']
    #allocation8 [shape = 'u8[65536]{0}', space=vmem, size = 0x10000, scoped, tag = 'output window, operand 0']
    %8 = vsyncpa [#allocation3], 0
    %s9 = scalar_lea.sflag [#allocation3], 1
    %10 = vsyncpa %s9, 0
    %11 = vsyncpa [#allocation6], 0
    %12 = vsyncpa [#allocation4], 0
    %s13 = scalar_lea.sflag [#allocation4], 1
    %14 = vsyncpa %s13, 0
    loop: start=0, step=1, limit=4
    $region2: #{tpu_custom_call.1} parent=1 // loop_pre_header
      _
    $region3: #{tpu_custom_call.1} parent=1 // loop_header
      %s16 = sphi 0, %s20
      %p17 = scmp.ge.s32.totalorder %s16, 4
      %s26 = sphi 0, %s28
      %s29 = sphi 0, %s26
      %s30 = sphi 0, %s29
      %s46 = sphi 0, %s30
      %s50 = sphi 0, %s50
      %s52 = sphi 0, %s50
      %s53 = sphi 0, %s52
      %s67 = sphi 0, %s53
      %s71 = sphi 0, %s71
      %s73 = sphi 0, %s71
      %s74 = sphi 0, %s73
      %s88 = sphi 0, %s74
      %s94 = sphi 0, %s96
      %s97 = sphi 0, %s94
      %s98 = sphi 0, %s97
      %s114 = sphi 0, %s98
    $region4: #{tpu_custom_call.1} parent=1 // loop_header_branch
      %19 = sbr.rel (%p17) target = $region8
    $region5: #{tpu_custom_call.1} parent=1 // loop_body
      %s21 = ssub.s32 %s16, 1
      %s22 = ssub.s32 %s16, 2
      %s23 = sadd.s32 %s16, 1
      %s24 = ssub.s32 %s16, %s23
      %p25 = scmp.eq.s32.totalorder %s24, 0
      %s27 = sadd.s32 %s26, 1
      %s28 = scalar_select %p25, %s26, %s27
      %p31 = pneg %p25
      %p32 = scmp.eq.s32.totalorder %s16, 1
      %p33 = por %p31, %p32
      %p34 = scmp.ne.s32.totalorder %s26, %s29
      %p35 = scmp.eq.s32.totalorder %s16, 0
      %p36 = por %p34, %p35
      %p37 = scmp.ne.s32.totalorder %s26, %s29
      %p38 = scmp.eq.s32.totalorder %s21, 1
      %p39 = por %p37, %p38
      %p40 = scmp.ne.s32.totalorder %s29, %s30
      %p41 = scmp.eq.s32.totalorder %s21, 0
      %p42 = por %p40, %p41
      %p43 = scmp.ne.s32.totalorder %s29, %s30
      %p44 = scmp.eq.s32.totalorder %s22, 1
      %p45 = por %p43, %p44
      %p47 = scmp.ne.s32.totalorder %s30, %s46
      %p48 = scmp.eq.s32.totalorder %s22, 0
      %p49 = por %p47, %p48
      %s51 = sadd.s32 %s50, 1
      %p54 = scmp.eq.s32.totalorder %s16, 1
      %p55 = scmp.ne.s32.totalorder %s50, %s52
      %p56 = scmp.eq.s32.totalorder %s16, 0
      %p57 = por %p55, %p56
      %p58 = scmp.ne.s32.totalorder %s50, %s52
      %p59 = scmp.eq.s32.totalorder %s21, 1
      %p60 = por %p58, %p59
      %p61 = scmp.ne.s32.totalorder %s52, %s53
      %p62 = scmp.eq.s32.totalorder %s21, 0
      %p63 = por %p61, %p62
      %p64 = scmp.ne.s32.totalorder %s52, %s53
      %p65 = scmp.eq.s32.totalorder %s22, 1
      %p66 = por %p64, %p65
      %p68 = scmp.ne.s32.totalorder %s53, %s67
      %p69 = scmp.eq.s32.totalorder %s22, 0
      %p70 = por %p68, %p69
      %s72 = sadd.s32 %s71, 1
      %p75 = scmp.eq.s32.totalorder %s16, 1
      %p76 = scmp.ne.s32.totalorder %s71, %s73
      %p77 = scmp.eq.s32.totalorder %s16, 0
      %p78 = por %p76, %p77
      %p79 = scmp.ne.s32.totalorder %s71, %s73
      %p80 = scmp.eq.s32.totalorder %s21, 1
      %p81 = por %p79, %p80
      %p82 = scmp.ne.s32.totalorder %s73, %s74
      %p83 = scmp.eq.s32.totalorder %s21, 0
      %p84 = por %p82, %p83
      %p85 = scmp.ne.s32.totalorder %s73, %s74
      %p86 = scmp.eq.s32.totalorder %s22, 1
      %p87 = por %p85, %p86
      %p89 = scmp.ne.s32.totalorder %s74, %s88
      %p90 = scmp.eq.s32.totalorder %s22, 0
      %p91 = por %p89, %p90
      %s92 = ssub.s32 %s16, %s23
      %p93 = scmp.eq.s32.totalorder %s92, 0
      %s95 = sadd.s32 %s94, 1
      %s96 = scalar_select %p93, %s94, %s95
      %p99 = pneg %p93
      %p100 = scmp.eq.s32.totalorder %s16, 1
      %p101 = por %p99, %p100
      %p102 = scmp.ne.s32.totalorder %s94, %s97
      %p103 = scmp.eq.s32.totalorder %s16, 0
      %p104 = por %p102, %p103
      %p105 = scmp.ne.s32.totalorder %s94, %s97
      %p106 = scmp.eq.s32.totalorder %s21, 1
      %p107 = por %p105, %p106
      %p108 = scmp.ne.s32.totalorder %s97, %s98
      %p109 = scmp.eq.s32.totalorder %s21, 0
      %p110 = por %p108, %p109
      %p111 = scmp.ne.s32.totalorder %s97, %s98
      %p112 = scmp.eq.s32.totalorder %s22, 1
      %p113 = por %p111, %p112
      %p115 = scmp.ne.s32.totalorder %s98, %s114
      %p116 = scmp.eq.s32.totalorder %s22, 0
      %p117 = por %p115, %p116
      %p118 = scmp.le.s32.totalorder 1, %s16
      %p119 = scmp.lt.s32.totalorder %s16, 3
      %p120 = pnand %p118, %p119
      %p121 = pneg %p120
      // Predicated region
      $region9: #{tpu_custom_call.1} parent=5 // pred_check
        _
      $region10: #{tpu_custom_call.1} parent=5 // pred_check_branch
        %123 = sbr.rel (%p120) target = $region12
      $region11: #{tpu_custom_call.1} parent=5 // pred_region
        %s124 = ssub.s32 %s16, 1
        // Predicated region
        $region13: #{tpu_custom_call.1} parent=11 // pred_check
          %p125 = pneg %p63
        $region14: #{tpu_custom_call.1} parent=11 // pred_check_branch
          %127 = sbr.rel (%p125) target = $region16
        $region15: #{tpu_custom_call.1} parent=11 // pred_region
          %s129 = ssub.s32 128, 128
          %130 = vsyncadd [#allocation6], %s129
          %s132 = sshll.u32 [#allocation5], 4
          %s133 = int_to_ptr.vmem [resolvable:$true] %s132
          %135 = dma.hbm_to_vmem [thread:$0]  %s1, 128, %s133, [#allocation6]
        $region16: #{tpu_custom_call.1} parent=11 // pred_fallthru
          _
        // Predicated region
        $region17: #{tpu_custom_call.1} parent=11 // pred_check
          %p136 = pneg %p84
        $region18: #{tpu_custom_call.1} parent=11 // pred_check_branch
          %138 = sbr.rel (%p136) target = $region20
        $region19: #{tpu_custom_call.1} parent=11 // pred_region
          %s140 = ssub.s32 128, 128
          %141 = vsyncadd [#allocation6], %s140
          %s143 = sshll.u32 [#allocation7], 4
          %s144 = int_to_ptr.vmem [resolvable:$true] %s143
          %146 = dma.hbm_to_vmem [thread:$0]  %s2, 128, %s144, [#allocation6]
        $region20: #{tpu_custom_call.1} parent=11 // pred_fallthru
          _
      $region12: #{tpu_custom_call.1} parent=5 // pred_fallthru
        _
      %p147 = scmp.lt.s32.totalorder %s16, 2
      // Predicated region
      $region21: #{tpu_custom_call.1} parent=5 // pred_check
        %p148 = pneg %p147
      $region22: #{tpu_custom_call.1} parent=5 // pred_check_branch
        %150 = sbr.rel (%p148) target = $region24
      $region23: #{tpu_custom_call.1} parent=5 // pred_region
        // Predicated region
        $region25: #{tpu_custom_call.1} parent=23 // pred_check
          %p151 = pneg %p36
        $region26: #{tpu_custom_call.1} parent=23 // pred_check_branch
          %153 = sbr.rel (%p151) target = $region28
        $region27: #{tpu_custom_call.1} parent=23 // pred_region
          %s154 = sand.u32 %s26, 1
          %s155 = scalar_lea.sflag [#allocation3], %s154
          %s156 = sand.u32 %s26, 1
          %s157 = smul.addr %s156, 64
          %s158 = scalar_lea.vmem [#allocation2], %s157
          %s160 = ssub.s32 1024, 1024
          %161 = vsyncadd %s155, %s160
          %s162 = smul.addr %s16, 8
          %s163 = smul.addr %s162, 128
          %s164 = scalar_lea.hbm %s0, %s163
          %s166 = sshll.u32 %s158, 4
          %s167 = int_to_ptr.vmem [resolvable:$true] %s166
          %169 = dma.hbm_to_vmem [thread:$0]  %s164, 1024, %s167, %s155
        $region28: #{tpu_custom_call.1} parent=23 // pred_fallthru
          _
      $region24: #{tpu_custom_call.1} parent=5 // pred_fallthru
        _
      %p170 = scmp.le.s32.totalorder 1, %s16
      %p171 = scmp.lt.s32.totalorder %s16, 3
      %p172 = pnand %p170, %p171
      %p173 = pneg %p172
      // Predicated region
      $region29: #{tpu_custom_call.1} parent=5 // pred_check
        _
      $region30: #{tpu_custom_call.1} parent=5 // pred_check_branch
        %175 = sbr.rel (%p172) target = $region32
      $region31: #{tpu_custom_call.1} parent=5 // pred_region
        %s176 = ssub.s32 %s16, 1
        %s177 = sand.u32 %s29, 1
        %s178 = scalar_lea.sflag [#allocation3], %s177
        %s179 = sand.u32 %s29, 1
        %s180 = smul.addr %s179, 64
        %s181 = scalar_lea.vmem [#allocation2], %s180
        // Predicated region
        $region33: #{tpu_custom_call.1} parent=31 // pred_check
          %p182 = pneg %p42
        $region34: #{tpu_custom_call.1} parent=31 // pred_check_branch
          %184 = sbr.rel (%p182) target = $region36
        $region35: #{tpu_custom_call.1} parent=31 // pred_region
          %185 = dma.done %s178, 1024
        $region36: #{tpu_custom_call.1} parent=31 // pred_fallthru
          _
        // Predicated region
        $region37: #{tpu_custom_call.1} parent=31 // pred_check
          %p186 = pneg %p63
        $region38: #{tpu_custom_call.1} parent=31 // pred_check_branch
          %188 = sbr.rel (%p186) target = $region40
        $region39: #{tpu_custom_call.1} parent=31 // pred_region
          %189 = dma.done [#allocation6], 128
        $region40: #{tpu_custom_call.1} parent=31 // pred_fallthru
          _
        // Predicated region
        $region41: #{tpu_custom_call.1} parent=31 // pred_check
          %p190 = pneg %p84
        $region42: #{tpu_custom_call.1} parent=31 // pred_check_branch
          %192 = sbr.rel (%p190) target = $region44
        $region43: #{tpu_custom_call.1} parent=31 // pred_region
          %193 = dma.done [#allocation6], 128
        $region44: #{tpu_custom_call.1} parent=31 // pred_fallthru
          _
        %s194 = sand.u32 %s29, 1
        %s195 = scalar_lea.sflag [#allocation3], %s194
        %s196 = sand.u32 %s29, 1
        %s197 = smul.addr %s196, 64
        %s198 = scalar_lea.vmem [#allocation2], %s197
        %p199 = pneg %p42
        %p200 = pneg %p39
        %p201 = pneg %p63
        %p202 = pneg %p60
        %p203 = pneg %p84
        %p204 = pneg %p81
        %p205 = pneg %p110
        %p206 = pneg %p107
        %s207 = sand.u32 %s97, 1
        %s208 = scalar_lea.sflag [#allocation4], %s207
        %s209 = sand.u32 %s97, 1
        %s210 = smul.addr %s209, 64
        %s211 = scalar_lea.vmem [#allocation8], %s210
        %v212 = vld [vmem:[#allocation5] sm:$0xff]
        %v213 = vld [vmem:[#allocation7] sm:$0xff]
        %v214 = vld [vmem:[%s181] sm:$0xff]
        %v215 = vld [vmem:[%s181 + $0x8] sm:$0xff]
        %v216 = vld [vmem:[%s181 + $0x10] sm:$0xff]
        %v217 = vld [vmem:[%s181 + $0x18] sm:$0xff]
        %v218 = vld [vmem:[%s181 + $0x20] sm:$0xff]
        %v219 = vld [vmem:[%s181 + $0x28] sm:$0xff]
        %v220 = vld [vmem:[%s181 + $0x30] sm:$0xff]
        %v221 = vld [vmem:[%s181 + $0x38] sm:$0xff]
        %v222 = vadd.f32 %v214, %v215
        %v223 = vadd.f32 %v222, %v216
        %v224 = vadd.f32 %v223, %v217
        %v225 = vadd.f32 %v224, %v218
        %v226 = vadd.f32 %v225, %v219
        %v227 = vadd.f32 %v226, %v220
        %v228 = vadd.f32 %v227, %v221
        %229 = vadd.xlane.f32.xlu0 %v228
        %v230 = vpop.xlane.xlu0 %229
        %v231 = vmul.f32 %v230, 0.0009765625
        %v232 = vsub.f32 %v214, %v231
        %v233 = vsub.f32 %v215, %v231
        %v234 = vsub.f32 %v216, %v231
        %v235 = vsub.f32 %v217, %v231
        %v236 = vsub.f32 %v218, %v231
        %v237 = vsub.f32 %v219, %v231
        %v238 = vsub.f32 %v220, %v231
        %v239 = vsub.f32 %v221, %v231
        %v240 = vmul.f32 %v232, %v232
        %v241 = vmul.f32 %v233, %v233
        %v242 = vmul.f32 %v234, %v234
        %v243 = vmul.f32 %v235, %v235
        %v244 = vmul.f32 %v236, %v236
        %v245 = vmul.f32 %v237, %v237
        %v246 = vmul.f32 %v238, %v238
        %v247 = vmul.f32 %v239, %v239
        %v248 = vadd.f32 %v240, %v241
        %v249 = vadd.f32 %v248, %v242
        %v250 = vadd.f32 %v249, %v243
        %v251 = vadd.f32 %v250, %v244
        %v252 = vadd.f32 %v251, %v245
        %v253 = vadd.f32 %v252, %v246
        %v254 = vadd.f32 %v253, %v247
        %255 = vadd.xlane.f32.xlu0 %v254
        %v256 = vpop.xlane.xlu0 %255
        %v257 = vmul.f32 %v256, 0.0009765625
        %v258 = vadd.f32 %v257, 1e-05
        %v259 = vrsqrt.pop %v258
        %v260 = vmul.f32 %v232, %v259
        %v261 = vmul.f32 %v233, %v259
        %v262 = vmul.f32 %v234, %v259
        %v263 = vmul.f32 %v235, %v259
        %v264 = vmul.f32 %v236, %v259
        %v265 = vmul.f32 %v237, %v259
        %v266 = vmul.f32 %v238, %v259
        %v267 = vmul.f32 %v239, %v259
        %v269 = vlaneseq
        %v270 = vshrl.u32 %v269, 7
        %v271 = vsub.s32 0, %v270
        %v272 = vrot.slane %v212, %v271
        %v273 = vlaneseq
        %v274 = vshrl.u32 %v273, 7
        %v275 = vsub.s32 1, %v274
        %v276 = vrot.slane %v212, %v275
        %v277 = vlaneseq
        %v278 = vshrl.u32 %v277, 7
        %v279 = vsub.s32 2, %v278
        %v280 = vrot.slane %v212, %v279
        %v281 = vlaneseq
        %v282 = vshrl.u32 %v281, 7
        %v283 = vsub.s32 3, %v282
        %v284 = vrot.slane %v212, %v283
        %v285 = vlaneseq
        %v286 = vshrl.u32 %v285, 7
        %v287 = vsub.s32 4, %v286
        %v288 = vrot.slane %v212, %v287
        %v289 = vlaneseq
        %v290 = vshrl.u32 %v289, 7
        %v291 = vsub.s32 5, %v290
        %v292 = vrot.slane %v212, %v291
        %v293 = vlaneseq
        %v294 = vshrl.u32 %v293, 7
        %v295 = vsub.s32 6, %v294
        %v296 = vrot.slane %v212, %v295
        %v297 = vlaneseq
        %v298 = vshrl.u32 %v297, 7
        %v299 = vsub.s32 7, %v298
        %v300 = vrot.slane %v212, %v299
        %v309 = vmul.f32 %v260, %v272
        %v310 = vmul.f32 %v261, %v276
        %v311 = vmul.f32 %v262, %v280
        %v312 = vmul.f32 %v263, %v284
        %v313 = vmul.f32 %v264, %v288
        %v314 = vmul.f32 %v265, %v292
        %v315 = vmul.f32 %v266, %v296
        %v316 = vmul.f32 %v267, %v300
        %v318 = vlaneseq
        %v319 = vshrl.u32 %v318, 7
        %v320 = vsub.s32 0, %v319
        %v321 = vrot.slane %v213, %v320
        %v322 = vlaneseq
        %v323 = vshrl.u32 %v322, 7
        %v324 = vsub.s32 1, %v323
        %v325 = vrot.slane %v213, %v324
        %v326 = vlaneseq
        %v327 = vshrl.u32 %v326, 7
        %v328 = vsub.s32 2, %v327
        %v329 = vrot.slane %v213, %v328
        %v330 = vlaneseq
        %v331 = vshrl.u32 %v330, 7
        %v332 = vsub.s32 3, %v331
        %v333 = vrot.slane %v213, %v332
        %v334 = vlaneseq
        %v335 = vshrl.u32 %v334, 7
        %v336 = vsub.s32 4, %v335
        %v337 = vrot.slane %v213, %v336
        %v338 = vlaneseq
        %v339 = vshrl.u32 %v338, 7
        %v340 = vsub.s32 5, %v339
        %v341 = vrot.slane %v213, %v340
        %v342 = vlaneseq
        %v343 = vshrl.u32 %v342, 7
        %v344 = vsub.s32 6, %v343
        %v345 = vrot.slane %v213, %v344
        %v346 = vlaneseq
        %v347 = vshrl.u32 %v346, 7
        %v348 = vsub.s32 7, %v347
        %v349 = vrot.slane %v213, %v348
        %v358 = vadd.f32 %v309, %v321
        %v359 = vadd.f32 %v310, %v325
        %v360 = vadd.f32 %v311, %v329
        %v361 = vadd.f32 %v312, %v333
        %v362 = vadd.f32 %v313, %v337
        %v363 = vadd.f32 %v314, %v341
        %v364 = vadd.f32 %v315, %v345
        %v365 = vadd.f32 %v316, %v349
        %366 = vst [vmem:[%s211] sm:$0xff] %v358
        %367 = vst [vmem:[%s211 + $0x8] sm:$0xff] %v359
        %368 = vst [vmem:[%s211 + $0x10] sm:$0xff] %v360
        %369 = vst [vmem:[%s211 + $0x18] sm:$0xff] %v361
        %370 = vst [vmem:[%s211 + $0x20] sm:$0xff] %v362
        %371 = vst [vmem:[%s211 + $0x28] sm:$0xff] %v363
        %372 = vst [vmem:[%s211 + $0x30] sm:$0xff] %v364
        %373 = vst [vmem:[%s211 + $0x38] sm:$0xff] %v365
        %s374 = sand.u32 %s97, 1
        %s375 = scalar_lea.sflag [#allocation4], %s374
        %s376 = sand.u32 %s97, 1
        %s377 = smul.addr %s376, 64
        %s378 = scalar_lea.vmem [#allocation8], %s377
        // Predicated region
        $region45: #{tpu_custom_call.1} parent=31 // pred_check
          %p379 = pneg %p107
        $region46: #{tpu_custom_call.1} parent=31 // pred_check_branch
          %381 = sbr.rel (%p379) target = $region48
        $region47: #{tpu_custom_call.1} parent=31 // pred_region
          %s383 = ssub.s32 1024, 1024
          %384 = vsyncadd %s375, %s383
          %s385 = smul.addr %s21, 8
          %s386 = smul.addr %s385, 128
          %s387 = scalar_lea.hbm %s3, %s386
          %s389 = sshll.u32 %s378, 4
          %s390 = int_to_ptr.vmem [resolvable:$true] %s389
          %392 = dma.vmem_to_hbm [thread:$0]  %s390, 1024, %s387, %s375
        $region48: #{tpu_custom_call.1} parent=31 // pred_fallthru
          _
      $region32: #{tpu_custom_call.1} parent=5 // pred_fallthru
        _
      %p393 = scmp.le.s32.totalorder 2, %s16
      // Predicated region
      $region49: #{tpu_custom_call.1} parent=5 // pred_check
        %p394 = pneg %p393
      $region50: #{tpu_custom_call.1} parent=5 // pred_check_branch
        %396 = sbr.rel (%p394) target = $region52
      $region51: #{tpu_custom_call.1} parent=5 // pred_region
        %s397 = ssub.s32 %s16, 2
        // Predicated region
        $region53: #{tpu_custom_call.1} parent=51 // pred_check
          %p398 = pneg %p113
        $region54: #{tpu_custom_call.1} parent=51 // pred_check_branch
          %400 = sbr.rel (%p398) target = $region56
        $region55: #{tpu_custom_call.1} parent=51 // pred_region
          %s401 = sand.u32 %s98, 1
          %s402 = scalar_lea.sflag [#allocation4], %s401
          %s403 = sand.u32 %s98, 1
          %s404 = smul.addr %s403, 64
          %s405 = scalar_lea.vmem [#allocation8], %s404
          %406 = dma.done %s402, 1024
        $region56: #{tpu_custom_call.1} parent=51 // pred_fallthru
          _
      $region52: #{tpu_custom_call.1} parent=5 // pred_fallthru
        _
    $region6: #{tpu_custom_call.1} parent=1 // loop_footer
      %s20 = sadd.s32 1, %s16
    $region7: #{tpu_custom_call.1} parent=1 // loop_footer_branch
      %15 = sbr.rel target = $region3
    $region8: #{tpu_custom_call.1} parent=1 // loop_exit
      _
    %407 = vsyncpa [#allocation3], 1
    %s408 = scalar_lea.sflag [#allocation3], 1
    %409 = vsyncpa %s408, 1
    %410 = vsyncpa [#allocation6], 1
    %411 = vsyncpa [#allocation4], 1
    %s412 = scalar_lea.sflag [#allocation4], 1
    %413 = vsyncpa %s412, 1

</llo_original>
